<compile_context>
chip_gen: v6e
topology: v6e:2x2x1
jax: 0.10.0
libtpu: 0.0.40
codegen_flags: <defaults>
</compile_context>

<pallas_src>
import jax
import jax.numpy as jnp
from jax.experimental import pallas as pl
from jax.experimental.pallas import tpu as pltpu


def _sigmoid_kernel(x_ref, o_ref):
    # Elementwise: 1 / (1 + exp(-x)), computed in f32, cast back on store.
    x = x_ref[...].astype(jnp.float32)
    denom = 1.0 + jnp.exp(-x)                       # exp on the EUP
    o_ref[...] = pl.reciprocal(denom, approx=False).astype(o_ref.dtype)


def sigmoid_pallas(x: jax.Array, *, target_block_bytes: int = 2 * 1024 * 1024) -> jax.Array:
    """Apply sigmoid elementwise via a Pallas TPU kernel.

    Works for any input shape; internally flattens to a wide lane-dense
    (rows, lanes) slab with lanes a large multiple of 128 and ~2 MiB blocks.
    """
    orig_shape = x.shape
    dtype = x.dtype
    n = x.size
    itemsize = jnp.dtype(dtype).itemsize
    # Sublane packing multiple: 8 for f32, 16 for bf16/f16, 32 for int8.
    sub = max(8, 32 // itemsize)

    # ---- choose a wide, lane-dense slab width (multiple of 128) -----------
    lanes = 128
    for w in (4096, 2048, 1024, 512, 256):
        if n >= sub * w:
            lanes = w
            break
    rows = -(-n // lanes)                # ceil(n / lanes)
    rows = -(-rows // sub) * sub         # round rows up to sublane multiple

    # ---- choose block rows: ~target_block_bytes per block ------------------
    tile_rows = max(sub, (target_block_bytes // (lanes * itemsize)) // sub * sub)
    tile_rows = min(tile_rows, rows)
    # Prefer >= 2 grid steps so both TensorCores on v7x get work.
    if tile_rows == rows and rows >= 2 * sub:
        tile_rows = max(sub, (rows // 2) // sub * sub)
    rows = -(-rows // tile_rows) * tile_rows   # rows is a multiple of tile_rows
    pad = rows * lanes - n

    # ---- wrapper-side layout plumbing (zero extra HBM passes when pad==0) --
    x_flat = jnp.ravel(x)
    if pad:
        x_flat = jnp.pad(x_flat, (0, pad))
    x2d = x_flat.reshape(rows, lanes)

    grid = (rows // tile_rows,)
    out2d = pl.pallas_call(
        _sigmoid_kernel,
        out_shape=jax.ShapeDtypeStruct((rows, lanes), dtype),
        grid_spec=pltpu.PrefetchScalarGridSpec(
            num_scalar_prefetch=0,
            grid=grid,
            in_specs=[pl.BlockSpec((tile_rows, lanes), lambda i: (i, 0))],
            out_specs=pl.BlockSpec((tile_rows, lanes), lambda i: (i, 0)),
        ),
        compiler_params=pltpu.CompilerParams(
            dimension_semantics=("parallel",),
        ),
    )(x2d)

    if pad:
        return out2d.reshape(-1)[:n].reshape(orig_shape)
    return out2d.reshape(orig_shape)


if __name__ == "__main__":
    key = jax.random.PRNGKey(0)
    # Small NCHW input consistent with the module's typical use (conv features).
    x = jax.random.normal(key, (2, 4, 16, 16), dtype=jnp.float32)

    y = sigmoid_pallas(x)
    jax.block_until_ready(y)

    # Correctness check against the pure-JAX reference (same math as PyTorch).
    y_ref = 1.0 / (1.0 + jnp.exp(-x))
    assert y.shape == x.shape and y.dtype == x.dtype
    assert jnp.allclose(y, y_ref, atol=1e-6, rtol=1e-6)

    print("KERNEL_OK")
</pallas_src>

<mosaic_0001>
module attributes {stable_mosaic.version = 11 : i64} {
  func.func @_sigmoid_kernel(%arg0: i32, %arg1: memref<8x256xf32, #tpu.memory_space<vmem>>, %arg2: memref<8x256xf32, #tpu.memory_space<vmem>>) attributes {dimension_semantics = [#tpu.dimension_semantics<parallel>], iteration_bounds = array<i64: 1>, scalar_prefetch = 0 : i64, scratch_operands = 0 : i64, tpu.core_type = #tpu.core_type<tc>, window_params = [{transform_indices = @transform_0, window_bounds = array<i64: 8, 256>}, {transform_indices = @transform_1, window_bounds = array<i64: 8, 256>}]} {
    %c0 = arith.constant 0 : index
    %c0_0 = arith.constant 0 : index
    %0 = vector.load %arg1[%c0, %c0_0] : memref<8x256xf32, #tpu.memory_space<vmem>>, vector<8x256xf32>
    %cst = arith.constant 0.000000e+00 : f32
    %1 = vector.broadcast %cst : f32 to vector<8x256xf32>
    %2 = arith.subf %1, %0 : vector<8x256xf32>
    %3 = math.exp %2 : vector<8x256xf32>
    %cst_1 = arith.constant 1.000000e+00 : f32
    %4 = vector.broadcast %cst_1 : f32 to vector<8x256xf32>
    %5 = arith.addf %4, %3 : vector<8x256xf32>
    %6 = tpu.reciprocal %5 : vector<8x256xf32> -> vector<8x256xf32>
    %c0_2 = arith.constant 0 : index
    %c0_3 = arith.constant 0 : index
    %7 = vector.load %arg2[%c0_2, %c0_3] : memref<8x256xf32, #tpu.memory_space<vmem>>, vector<8x256xf32>
    tpu.vector_store %arg2[%c0_2, %c0_3], %6 {strides = array<i32>} : memref<8x256xf32, #tpu.memory_space<vmem>>, vector<8x256xf32>,
    return
  }
  func.func @transform_0(%arg0: i32) -> (i32, i32) {
    %c0_i32 = arith.constant 0 : i32
    %c0_i32_0 = arith.constant 0 : i32
    return %arg0, %c0_i32 : i32, i32
  }
  func.func @transform_1(%arg0: i32) -> (i32, i32) {
    %c0_i32 = arith.constant 0 : i32
    %c0_i32_0 = arith.constant 0 : i32
    return %arg0, %c0_i32 : i32, i32
  }
}

</mosaic_0001>

<llo_original>
// kernel: tpu_custom_call.1
$region0: #{tpu_custom_call.1}
  #allocation0 [shape = 'u32[]', space=smem, size = 0x4, offset = 0x4, fixed_abs, tag = 'smem constant byte address 0x4 - core index']
  #allocation1 [shape = 'u32[144,128]{1,0:T(1,128)}', space=vmem, size = 0x12000, scoped, tag = 'internal scratch']
  %s0 = inlined_call_operand.hbm [shape: f32[8,256], index: 0, kind: input, shape index: {}]
  %s1 = inlined_call_operand.hbm [shape: f32[8,256], index: 1, kind: output, shape index: {}]
  %s2 = sld [smem:[#allocation0]]
  $region18: #{tpu_custom_call.1} parent=0
    _
  %s4 = ssub.s32 1, %s2
  %s5 = scalar_select 0, %s4, %s2
  $region1: #{tpu_custom_call.1} parent=0
    #allocation2 [shape = 'u8[8192]{0}', space=vmem, size = 0x2000, scoped, tag = 'input window, operand 0, single buffered']
    #allocation3 [shape = 's32[1]{0}', space=sflag, size = 0x4, scoped, tag = 'scoped memory for tpu_custom_call.1']
    #allocation4 [shape = 's32[1]{0}', space=sflag, size = 0x4, scoped, tag = 'scoped memory for tpu_custom_call.1']
    #allocation5 [shape = 'u8[8192]{0}', space=vmem, size = 0x2000, scoped, tag = 'output window, operand 0, single buffered']
    %6 = vsyncpa [#allocation3], 0
    %7 = vsyncpa [#allocation4], 0
    // Predicated region
    $region2: #{tpu_custom_call.1} parent=1 // pred_check
      _
    $region3: #{tpu_custom_call.1} parent=1 // pred_check_branch
      %9 = sbr.rel (0) target = $region5
    $region4: #{tpu_custom_call.1} parent=1 // pred_region
      %s11 = ssub.s32 256, 256
      %12 = vsyncadd [#allocation3], %s11
      %s14 = sshll.u32 [#allocation2], 4
      %s15 = int_to_ptr.vmem [resolvable:$true] %s14
      %17 = dma.hbm_to_vmem [thread:$0]  %s0, 256, %s15, [#allocation3]
    $region5: #{tpu_custom_call.1} parent=1 // pred_fallthru
      _
    // Predicated region
    $region6: #{tpu_custom_call.1} parent=1 // pred_check
      _
    $region7: #{tpu_custom_call.1} parent=1 // pred_check_branch
      %19 = sbr.rel (0) target = $region9
    $region8: #{tpu_custom_call.1} parent=1 // pred_region
      %20 = dma.done [#allocation3], 256
    $region9: #{tpu_custom_call.1} parent=1 // pred_fallthru
      _
    %v21 = vld [vmem:[#allocation2] sm:$0xff]
    %v22 = vld [vmem:[#allocation2 + $0x8] sm:$0xff]
    %v23 = vsub.f32 0.0, %v21
    %v24 = vsub.f32 0.0, %v22
    %v25 = vmul.f32 %v23, 1.442695
    %v26 = vpow.pop %v25
    %v27 = vmul.f32 %v24, 1.442695
    %v28 = vpow.pop %v27
    %v29 = vadd.f32 %v26, 1.0
    %v30 = vadd.f32 %v28, 1.0
    %v31 = vrcp.pop %v29
    %v32 = vrcp.pop %v30
    %33 = vst [vmem:[#allocation5] sm:$0xff] %v31
    %34 = vst [vmem:[#allocation5 + $0x8] sm:$0xff] %v32
    // Predicated region
    $region10: #{tpu_custom_call.1} parent=1 // pred_check
      _
    $region11: #{tpu_custom_call.1} parent=1 // pred_check_branch
      %36 = sbr.rel (0) target = $region13
    $region12: #{tpu_custom_call.1} parent=1 // pred_region
      %s38 = ssub.s32 256, 256
      %39 = vsyncadd [#allocation4], %s38
      %s41 = sshll.u32 [#allocation5], 4
      %s42 = int_to_ptr.vmem [resolvable:$true] %s41
      %44 = dma.vmem_to_hbm [thread:$0]  %s42, 256, %s1, [#allocation4]
    $region13: #{tpu_custom_call.1} parent=1 // pred_fallthru
      _
    // Predicated region
    $region14: #{tpu_custom_call.1} parent=1 // pred_check
      _
    $region15: #{tpu_custom_call.1} parent=1 // pred_check_branch
      %46 = sbr.rel (0) target = $region17
    $region16: #{tpu_custom_call.1} parent=1 // pred_region
      %47 = dma.done [#allocation4], 256
    $region17: #{tpu_custom_call.1} parent=1 // pred_fallthru
      _
    %48 = vsyncpa [#allocation3], 1
    %49 = vsyncpa [#allocation4], 1

</llo_original>
